<compile_context>
chip_gen: v7x
topology: tpu7x:2x2x1
jax: 0.10.0
libtpu: 0.0.40
codegen_flags: <defaults>
</compile_context>

<pallas_src>
import functools

import jax
import jax.numpy as jnp
from jax.experimental import pallas as pl
from jax.experimental.pallas import tpu as pltpu


def _pick_tile(n):
    # Largest frame tile that divides N and stays within default scoped VMEM on
    # every generation (v5e 16 MiB .. v7x 32 MiB) at production-sized N, C.
    # TODO(synk): on v5e/v6e raise to 512-1024 together with
    # pltpu.CompilerParams(vmem_limit_bytes=...) for large N.
    for t in (256, 128):
        if n % t == 0:
            return t
    return n


def _knn_kernel(keys_ref, qry_ref, idx_ref, ksq_ref, *, k):
    """k nearest frames (self included) for one (TQ, C) strip of query frames."""
    keys = keys_ref[0]                                     # (N, C)  resident key slab
    qry = qry_ref[0]                                       # (TQ, C) streamed query strip
    n, c = keys.shape
    tq = qry.shape[0]

    # ||x_j||^2 once per batch (reused by every query strip of this batch).
    @pl.when(pl.program_id(1) == 0)
    def _():
        k32 = keys.astype(jnp.float32)
        k32 = k32 * k32
        ones_row = jnp.ones((1, c), jnp.float32)
        ksq_ref[...] = jax.lax.dot_general(                # (1, N) row of key norms
            ones_row, k32, (((1,), (1,)), ((), ())),
            preferred_element_type=jnp.float32)

    # argmin_j ||x_j - x_i||^2 == argmin_j (||x_j||^2 - 2 x_j.x_i)
    # (query-norm term is constant per row -> dropped, argmin unchanged).
    gram = jax.lax.dot_general(qry, keys, (((1,), (1,)), ((), ())),
                               preferred_element_type=jnp.float32)        # (TQ, N)
    d = ksq_ref[...] - 2.0 * gram                                         # (TQ, N)

    col = jax.lax.broadcasted_iota(jnp.int32, (1, n), 1)                  # (1, N)
    out_col = jax.lax.broadcasted_iota(jnp.int32, (tq, k), 1)             # (TQ, k)
    res = jnp.zeros((tq, k), jnp.int32)
    for m in range(k):                          # k is small & static -> unrolled
        mn = jnp.min(d, axis=1, keepdims=True)                            # (TQ, 1)
        am = jnp.min(jnp.where(d == mn, col, n), axis=1, keepdims=True)   # first argmin
        res = jnp.where(out_col == m, am, res)
        d = jnp.where(col == am, jnp.float32(jnp.inf), d)
    idx_ref[0] = res                                                      # (TQ, k)


def _neigh_mlp_kernel(slab_ref, ctr_ref, idx_ref, w1_ref, w2_ref, b_ref, o_ref, *,
                      num_neigh, nfeat_mode, agg_type, edge_weight):
    """In-kernel neighbour gather + Linear(2C->C) + cosine edge weight + max/mean."""
    k = num_neigh
    slab = slab_ref[0]                                     # (C, N)  per-batch features
    ctr = ctr_ref[0]                                       # (C, TR) center columns
    idx = idx_ref[0]                                       # (TR, k) neighbour indices
    w1 = w1_ref[...]                                       # (C, C)  neighbour/diff half
    w2 = w2_ref[...]                                       # (C, C)  center half
    bias = b_ref[...]                                      # (C, 1)
    n = slab.shape[1]

    # Center half of the Linear, shared by every neighbour:  W2 @ ctr + b.
    base = jnp.dot(w2, ctr, preferred_element_type=jnp.float32) + bias    # (C, TR)
    if nfeat_mode == "dif_ctr":
        # W1 @ (fn - ctr) = W1 @ fn - W1 @ ctr ; fold the ctr part into base once.
        base = base - jnp.dot(w1, ctr, preferred_element_type=jnp.float32)

    col = jax.lax.broadcasted_iota(jnp.int32, (1, n), 1)                  # (1, N)
    if edge_weight == "true":
        ctr32 = ctr.astype(jnp.float32)
        # TODO(synk): the torch reference also has no eps; an all-zero frame -> NaN there too.
        inv_ctr = jax.lax.rsqrt(jnp.sum(ctr32 * ctr32, axis=0, keepdims=True))  # (1, TR)

    acc = None
    for m in range(k):                 # small static k; only (C, TR) temps stay live
        # Exact gather of neighbour m's features: one-hot (TR, N) @ slab^T on the MXU.
        onehot = (idx[:, m:m + 1] == col).astype(slab.dtype)              # (TR, N)
        fn = jax.lax.dot_general(slab, onehot, (((1,), (1,)), ((), ())),
                                 preferred_element_type=jnp.float32)      # (C, TR)
        val = jnp.dot(w1, fn.astype(slab.dtype),
                      preferred_element_type=jnp.float32) + base          # (C, TR)
        if edge_weight == "true":
            num = jnp.sum(fn * ctr32, axis=0, keepdims=True)              # (1, TR)
            inv_fn = jax.lax.rsqrt(jnp.sum(fn * fn, axis=0, keepdims=True))
            val = val * (num * inv_fn * inv_ctr)                          # cosine(fn, ctr)
        if acc is None:
            acc = val
        elif agg_type == "max":
            acc = jnp.maximum(acc, val)
        else:                                                             # "mean"
            acc = acc + val
    if agg_type != "max":
        acc = acc * (1.0 / k)
    o_ref[0] = acc.astype(o_ref.dtype)                    # (C, TR) -> final (B, C, N) layout


def neigh_conv(x, weight, bias, *, num_neigh, nfeat_mode="feat_ctr",
               agg_type="max", edge_weight="true"):
    """x: (B, C, N); weight: (C, 2C) from nn.Linear(2C, C); bias: (C,) -> (B, C, N)."""
    B, C, N = x.shape
    k = num_neigh
    if nfeat_mode not in ("feat_ctr", "dif_ctr"):
        # TODO(synk): 'feat' mode is shape-incompatible with nn.Linear(2C, C) upstream.
        raise NotImplementedError(nfeat_mode)

    # --- Kernel 1: semantic kNN indices, written as (B, N, k) ---
    # Channels-last copy is used only by the kNN kernel so the Gram matmul stays in
    # the natively supported contract-last-dim MXU form.
    # TODO(synk): fold this transpose into kernel 1 via an in-kernel strip transpose.
    xt = jnp.transpose(x, (0, 2, 1))                          # (B, N, C)
    TQ = _pick_tile(N)
    idx = pl.pallas_call(
        functools.partial(_knn_kernel, k=k),
        out_shape=jax.ShapeDtypeStruct((B, N, k), jnp.int32),
        grid=(B, N // TQ),
        in_specs=[pl.BlockSpec((1, N, C), lambda b, q: (b, 0, 0)),    # resident key slab
                  pl.BlockSpec((1, TQ, C), lambda b, q: (b, q, 0))],  # streamed query strip
        out_specs=pl.BlockSpec((1, TQ, k), lambda b, q: (b, q, 0)),
        scratch_shapes=[pltpu.VMEM((1, N), jnp.float32)],             # hoisted ||key||^2
        compiler_params=pltpu.CompilerParams(
            dimension_semantics=("parallel", "arbitrary")),
    )(xt, xt)

    # torch nn.Linear(2C, C):  y = cat([neigh|diff, ctr], -1) @ W.T + b
    #   => y.T = W[:, :C] @ neigh.T + W[:, C:] @ ctr.T + b[:, None]   (halves used as-is)
    w1 = weight[:, :C]                                        # (C, C) neighbour/diff half
    w2 = weight[:, C:]                                        # (C, C) center half
    b2 = bias.reshape(C, 1)

    # --- Kernel 2: fused gather + MLP + edge weight + aggregation, channels-first ---
    TR = _pick_tile(N)
    out = pl.pallas_call(
        functools.partial(_neigh_mlp_kernel, num_neigh=k, nfeat_mode=nfeat_mode,
                          agg_type=agg_type, edge_weight=edge_weight),
        out_shape=jax.ShapeDtypeStruct((B, C, N), x.dtype),
        grid=(B, N // TR),
        in_specs=[
            pl.BlockSpec((1, C, N), lambda b, r: (b, 0, 0)),   # resident feature slab
            pl.BlockSpec((1, C, TR), lambda b, r: (b, 0, r)),  # center strip
            pl.BlockSpec((1, TR, k), lambda b, r: (b, r, 0)),  # kNN indices
            pl.BlockSpec((C, C), lambda b, r: (0, 0)),         # W neighbour/diff half
            pl.BlockSpec((C, C), lambda b, r: (0, 0)),         # W center half
            pl.BlockSpec((C, 1), lambda b, r: (0, 0)),         # bias column
        ],
        out_specs=pl.BlockSpec((1, C, TR), lambda b, r: (b, 0, r)),
        compiler_params=pltpu.CompilerParams(
            dimension_semantics=("parallel", "parallel")),
    )(x, x, idx, w1, w2, b2)
    return out                                                # (B, C, N), final layout


if __name__ == "__main__":
    B, C, N, K = 2, 32, 16, 4
    key = jax.random.PRNGKey(0)
    kx, kw, kb = jax.random.split(key, 3)
    x = jax.random.normal(kx, (B, C, N), dtype=jnp.float32)
    # nn.Linear(feat_channels * 2, feat_channels): weight (C, 2C), bias (C,)
    weight = jax.random.normal(kw, (C, 2 * C), dtype=jnp.float32) * 0.2
    bias = jax.random.normal(kb, (C,), dtype=jnp.float32) * 0.1

    out = neigh_conv(x, weight, bias, num_neigh=K,
                     nfeat_mode="feat_ctr", agg_type="max", edge_weight="true")
    out = jax.block_until_ready(out)
    assert out.shape == (B, C, N), out.shape
    assert bool(jnp.all(jnp.isfinite(out)))
    print("KERNEL_OK")
</pallas_src>

<mosaic_0001>
module attributes {stable_mosaic.version = 11 : i64} {
  func.func @_knn_kernel(%arg0: i32, %arg1: i32, %arg2: memref<1x16x32xf32, #tpu.memory_space<vmem>>, %arg3: memref<1x16x32xf32, #tpu.memory_space<vmem>>, %arg4: memref<1x16x4xi32, #tpu.memory_space<vmem>>, %arg5: memref<1x16xf32, #tpu.memory_space<vmem>>) attributes {dimension_semantics = [#tpu.dimension_semantics<parallel>, #tpu.dimension_semantics<arbitrary>], iteration_bounds = array<i64: 2, 1>, scalar_prefetch = 0 : i64, scratch_operands = 1 : i64, tpu.core_type = #tpu.core_type<tc>, window_params = [{transform_indices = @transform_0, window_bounds = array<i64: 1, 16, 32>}, {transform_indices = @transform_1, window_bounds = array<i64: 1, 16, 32>}, {transform_indices = @transform_2, window_bounds = array<i64: 1, 16, 4>}]} {
    %c0 = arith.constant 0 : index
    %c0_0 = arith.constant 0 : index
    %c0_1 = arith.constant 0 : index
    %0 = vector.load %arg2[%c0, %c0_0, %c0_1] : memref<1x16x32xf32, #tpu.memory_space<vmem>>, vector<1x16x32xf32>
    %1 = vector.shape_cast %0 : vector<1x16x32xf32> to vector<16x32xf32>
    %c0_2 = arith.constant 0 : index
    %c0_3 = arith.constant 0 : index
    %c0_4 = arith.constant 0 : index
    %2 = vector.load %arg3[%c0_2, %c0_3, %c0_4] : memref<1x16x32xf32, #tpu.memory_space<vmem>>, vector<1x16x32xf32>
    %3 = vector.shape_cast %2 : vector<1x16x32xf32> to vector<16x32xf32>
    %c0_i32 = arith.constant 0 : i32
    %4 = arith.cmpi eq, %arg1, %c0_i32 : i32
    %5 = arith.extui %4 : i1 to i32
    %c0_i32_5 = arith.constant 0 : i32
    %6 = arith.cmpi ne, %5, %c0_i32_5 : i32
    scf.if %6 {
      %94 = arith.mulf %1, %1 : vector<16x32xf32>
      %cst_28 = arith.constant 1.000000e+00 : f32
      %95 = vector.broadcast %cst_28 : f32 to vector<1x32xf32>
      %cst_29 = arith.constant dense<0.000000e+00> : vector<1x16xf32>
      %96 = tpu.matmul %95, %94, %cst_29 {dimension_numbers = #tpu.dot_dimension_numbers<[1], [1], [0], [0], [0, 0, 1, 0], [], []>} : vector<1x32xf32>, vector<16x32xf32>, vector<1x16xf32> -> vector<1x16xf32>
      %c0_30 = arith.constant 0 : index
      %c0_31 = arith.constant 0 : index
      %97 = vector.load %arg5[%c0_30, %c0_31] : memref<1x16xf32, #tpu.memory_space<vmem>>, vector<1x16xf32>
      tpu.vector_store %arg5[%c0_30, %c0_31], %96 {strides = array<i32>} : memref<1x16xf32, #tpu.memory_space<vmem>>, vector<1x16xf32>,
    } else {
    }
    %cst = arith.constant dense<0.000000e+00> : vector<16x16xf32>
    %7 = tpu.matmul %3, %1, %cst {dimension_numbers = #tpu.dot_dimension_numbers<[1], [1], [0], [0], [0, 0, 1, 0], [], []>} : vector<16x32xf32>, vector<16x32xf32>, vector<16x16xf32> -> vector<16x16xf32>
    %c0_6 = arith.constant 0 : index
    %c0_7 = arith.constant 0 : index
    %8 = vector.load %arg5[%c0_6, %c0_7] : memref<1x16xf32, #tpu.memory_space<vmem>>, vector<1x16xf32>
    %cst_8 = arith.constant 2.000000e+00 : f32
    %9 = vector.broadcast %cst_8 : f32 to vector<16x16xf32>
    %10 = arith.mulf %9, %7 : vector<16x16xf32>
    %11 = vector.broadcast %8 : vector<1x16xf32> to vector<16x16xf32>
    %12 = arith.subf %11, %10 : vector<16x16xf32>
    %13 = tpu.iota {dimensions = array<i32: 1>} : vector<1x16xi32>
    %14 = tpu.iota {dimensions = array<i32: 1>} : vector<16x4xi32>
    %c0_i32_9 = arith.constant 0 : i32
    %15 = vector.broadcast %c0_i32_9 : i32 to vector<16x4xi32>
    %cst_10 = arith.constant dense<0x7F800000> : vector<16xf32>
    %16 = vector.multi_reduction <minimumf>, %12, %cst_10 [1] : vector<16x16xf32> to vector<16xf32>
    %17 = vector.shape_cast %16 : vector<16xf32> to vector<16x1xf32>
    %18 = vector.broadcast %17 : vector<16x1xf32> to vector<16x16xf32>
    %19 = arith.cmpf oeq, %12, %18 : vector<16x16xf32>
    %c16_i32 = arith.constant 16 : i32
    %20 = vector.shape_cast %13 : vector<1x16xi32> to vector<1x16xi32>
    %21 = vector.broadcast %20 : vector<1x16xi32> to vector<16x16xi32>
    %22 = vector.broadcast %c16_i32 : i32 to vector<16x16xi32>
    %23 = arith.select %19, %21, %22 : vector<16x16xi1>, vector<16x16xi32>
    %cst_11 = arith.constant dense<2147483647> : vector<16xi32>
    %24 = vector.multi_reduction <minsi>, %23, %cst_11 [1] : vector<16x16xi32> to vector<16xi32>
    %25 = vector.shape_cast %24 : vector<16xi32> to vector<16x1xi32>
    %c0_i32_12 = arith.constant 0 : i32
    %26 = vector.broadcast %c0_i32_12 : i32 to vector<16x4xi32>
    %27 = arith.cmpi eq, %14, %26 : vector<16x4xi32>
    %28 = vector.shape_cast %25 : vector<16x1xi32> to vector<16x1xi32>
    %29 = vector.broadcast %28 : vector<16x1xi32> to vector<16x4xi32>
    %30 = arith.select %27, %29, %15 : vector<16x4xi1>, vector<16x4xi32>
    %31 = vector.broadcast %13 : vector<1x16xi32> to vector<16x16xi32>
    %32 = vector.broadcast %25 : vector<16x1xi32> to vector<16x16xi32>
    %33 = arith.cmpi eq, %31, %32 : vector<16x16xi32>
    %cst_13 = arith.constant 0x7F800000 : f32
    %34 = vector.broadcast %cst_13 : f32 to vector<16x16xf32>
    %35 = arith.select %33, %34, %12 : vector<16x16xi1>, vector<16x16xf32>
    %cst_14 = arith.constant dense<0x7F800000> : vector<16xf32>
    %36 = vector.multi_reduction <minimumf>, %35, %cst_14 [1] : vector<16x16xf32> to vector<16xf32>
    %37 = vector.shape_cast %36 : vector<16xf32> to vector<16x1xf32>
    %38 = vector.broadcast %37 : vector<16x1xf32> to vector<16x16xf32>
    %39 = arith.cmpf oeq, %35, %38 : vector<16x16xf32>
    %c16_i32_15 = arith.constant 16 : i32
    %40 = vector.shape_cast %13 : vector<1x16xi32> to vector<1x16xi32>
    %41 = vector.broadcast %40 : vector<1x16xi32> to vector<16x16xi32>
    %42 = vector.broadcast %c16_i32_15 : i32 to vector<16x16xi32>
    %43 = arith.select %39, %41, %42 : vector<16x16xi1>, vector<16x16xi32>
    %cst_16 = arith.constant dense<2147483647> : vector<16xi32>
    %44 = vector.multi_reduction <minsi>, %43, %cst_16 [1] : vector<16x16xi32> to vector<16xi32>
    %45 = vector.shape_cast %44 : vector<16xi32> to vector<16x1xi32>
    %c1_i32 = arith.constant 1 : i32
    %46 = vector.broadcast %c1_i32 : i32 to vector<16x4xi32>
    %47 = arith.cmpi eq, %14, %46 : vector<16x4xi32>
    %48 = vector.shape_cast %45 : vector<16x1xi32> to vector<16x1xi32>
    %49 = vector.broadcast %48 : vector<16x1xi32> to vector<16x4xi32>
    %50 = arith.select %47, %49, %30 : vector<16x4xi1>, vector<16x4xi32>
    %51 = vector.broadcast %13 : vector<1x16xi32> to vector<16x16xi32>
    %52 = vector.broadcast %45 : vector<16x1xi32> to vector<16x16xi32>
    %53 = arith.cmpi eq, %51, %52 : vector<16x16xi32>
    %cst_17 = arith.constant 0x7F800000 : f32
    %54 = vector.broadcast %cst_17 : f32 to vector<16x16xf32>
    %55 = arith.select %53, %54, %35 : vector<16x16xi1>, vector<16x16xf32>
    %cst_18 = arith.constant dense<0x7F800000> : vector<16xf32>
    %56 = vector.multi_reduction <minimumf>, %55, %cst_18 [1] : vector<16x16xf32> to vector<16xf32>
    %57 = vector.shape_cast %56 : vector<16xf32> to vector<16x1xf32>
    %58 = vector.broadcast %57 : vector<16x1xf32> to vector<16x16xf32>
    %59 = arith.cmpf oeq, %55, %58 : vector<16x16xf32>
    %c16_i32_19 = arith.constant 16 : i32
    %60 = vector.shape_cast %13 : vector<1x16xi32> to vector<1x16xi32>
    %61 = vector.broadcast %60 : vector<1x16xi32> to vector<16x16xi32>
    %62 = vector.broadcast %c16_i32_19 : i32 to vector<16x16xi32>
    %63 = arith.select %59, %61, %62 : vector<16x16xi1>, vector<16x16xi32>
    %cst_20 = arith.constant dense<2147483647> : vector<16xi32>
    %64 = vector.multi_reduction <minsi>, %63, %cst_20 [1] : vector<16x16xi32> to vector<16xi32>
    %65 = vector.shape_cast %64 : vector<16xi32> to vector<16x1xi32>
    %c2_i32 = arith.constant 2 : i32
    %66 = vector.broadcast %c2_i32 : i32 to vector<16x4xi32>
    %67 = arith.cmpi eq, %14, %66 : vector<16x4xi32>
    %68 = vector.shape_cast %65 : vector<16x1xi32> to vector<16x1xi32>
    %69 = vector.broadcast %68 : vector<16x1xi32> to vector<16x4xi32>
    %70 = arith.select %67, %69, %50 : vector<16x4xi1>, vector<16x4xi32>
    %71 = vector.broadcast %13 : vector<1x16xi32> to vector<16x16xi32>
    %72 = vector.broadcast %65 : vector<16x1xi32> to vector<16x16xi32>
    %73 = arith.cmpi eq, %71, %72 : vector<16x16xi32>
    %cst_21 = arith.constant 0x7F800000 : f32
    %74 = vector.broadcast %cst_21 : f32 to vector<16x16xf32>
    %75 = arith.select %73, %74, %55 : vector<16x16xi1>, vector<16x16xf32>
    %cst_22 = arith.constant dense<0x7F800000> : vector<16xf32>
    %76 = vector.multi_reduction <minimumf>, %75, %cst_22 [1] : vector<16x16xf32> to vector<16xf32>
    %77 = vector.shape_cast %76 : vector<16xf32> to vector<16x1xf32>
    %78 = vector.broadcast %77 : vector<16x1xf32> to vector<16x16xf32>
    %79 = arith.cmpf oeq, %75, %78 : vector<16x16xf32>
    %c16_i32_23 = arith.constant 16 : i32
    %80 = vector.shape_cast %13 : vector<1x16xi32> to vector<1x16xi32>
    %81 = vector.broadcast %80 : vector<1x16xi32> to vector<16x16xi32>
    %82 = vector.broadcast %c16_i32_23 : i32 to vector<16x16xi32>
    %83 = arith.select %79, %81, %82 : vector<16x16xi1>, vector<16x16xi32>
    %cst_24 = arith.constant dense<2147483647> : vector<16xi32>
    %84 = vector.multi_reduction <minsi>, %83, %cst_24 [1] : vector<16x16xi32> to vector<16xi32>
    %85 = vector.shape_cast %84 : vector<16xi32> to vector<16x1xi32>
    %c3_i32 = arith.constant 3 : i32
    %86 = vector.broadcast %c3_i32 : i32 to vector<16x4xi32>
    %87 = arith.cmpi eq, %14, %86 : vector<16x4xi32>
    %88 = vector.shape_cast %85 : vector<16x1xi32> to vector<16x1xi32>
    %89 = vector.broadcast %88 : vector<16x1xi32> to vector<16x4xi32>
    %90 = arith.select %87, %89, %70 : vector<16x4xi1>, vector<16x4xi32>
    %c0_25 = arith.constant 0 : index
    %c0_26 = arith.constant 0 : index
    %c0_27 = arith.constant 0 : index
    %91 = vector.load %arg4[%c0_25, %c0_26, %c0_27] : memref<1x16x4xi32, #tpu.memory_space<vmem>>, vector<1x16x4xi32>
    %92 = vector.shape_cast %91 : vector<1x16x4xi32> to vector<16x4xi32>
    %93 = vector.shape_cast %90 : vector<16x4xi32> to vector<1x16x4xi32>
    tpu.vector_store %arg4[%c0_25, %c0_26, %c0_27], %93 {strides = array<i32>} : memref<1x16x4xi32, #tpu.memory_space<vmem>>, vector<1x16x4xi32>,
    return
  }
  func.func @transform_0(%arg0: i32, %arg1: i32) -> (i32, i32, i32) {
    %c0_i32 = arith.constant 0 : i32
    %c0_i32_0 = arith.constant 0 : i32
    %c0_i32_1 = arith.constant 0 : i32
    return %arg0, %c0_i32, %c0_i32_0 : i32, i32, i32
  }
  func.func @transform_1(%arg0: i32, %arg1: i32) -> (i32, i32, i32) {
    %c0_i32 = arith.constant 0 : i32
    %c0_i32_0 = arith.constant 0 : i32
    return %arg0, %arg1, %c0_i32 : i32, i32, i32
  }
  func.func @transform_2(%arg0: i32, %arg1: i32) -> (i32, i32, i32) {
    %c0_i32 = arith.constant 0 : i32
    %c0_i32_0 = arith.constant 0 : i32
    return %arg0, %arg1, %c0_i32 : i32, i32, i32
  }
}

</mosaic_0001>

<llo_original>
// kernel: tpu_custom_call.1
$region0: #{tpu_custom_call.1}
  #allocation0 [shape = 'u32[]', space=smem, size = 0x4, offset = 0x4, fixed_abs, tag = 'smem constant byte address 0x4 - core index']
  #allocation1 [shape = 'u32[144,128]{1,0:T(1,128)}', space=vmem, size = 0x12000, scoped, tag = 'internal scratch']
  #allocation2 [shape = 'f32[1,16]{1,0:T(1,128)}', space=vmem, size = 0x200, scoped, tag = 'scratch operand']
  %s0 = inlined_call_operand.hbm [shape: f32[2,16,32], index: 0, kind: input, shape index: {}]
  %s1 = inlined_call_operand.hbm [shape: f32[2,16,32], index: 1, kind: input, shape index: {}]
  %s2 = inlined_call_operand.vmem [shape: s32[2,16,4], index: 2, kind: output, shape index: {}]
  %s3 = sld [smem:[#allocation0]]
  $region53: #{tpu_custom_call.1} parent=0
    _
  %s5 = ssub.s32 1, %s3
  %s6 = scalar_select 0, %s5, %s3
  $region1: #{tpu_custom_call.1} parent=0
    #allocation3 [shape = 'u8[16384]{0}', space=vmem, size = 0x4000, scoped, tag = 'input window, operand 0']
    #allocation4 [shape = 's32[2]{0}', space=sflag, size = 0x8, scoped, tag = 'scoped memory for tpu_custom_call.1']
    #allocation5 [shape = 'u8[16384]{0}', space=vmem, size = 0x4000, scoped, tag = 'input window, operand 1']
    #allocation6 [shape = 's32[2]{0}', space=sflag, size = 0x8, scoped, tag = 'scoped memory for tpu_custom_call.1']
    %7 = vsyncpa [#allocation4], 0
    %s8 = scalar_lea.sflag [#allocation4], 1
    %9 = vsyncpa %s8, 0
    %10 = vsyncpa [#allocation6], 0
    %s11 = scalar_lea.sflag [#allocation6], 1
    %12 = vsyncpa %s11, 0
    loop: start=0, step=1, limit=4
    $region2: #{tpu_custom_call.1} parent=1 // loop_pre_header
      _
    $region3: #{tpu_custom_call.1} parent=1 // loop_header
      %s14 = sphi 0, %s18
      %p15 = scmp.ge.s32.totalorder %s14, 4
      %s21 = sphi 0, %s33
      %s22 = sphi 0, %s29
      %s23 = sphi 0, %s21
      %s24 = sphi 0, %s22
      %s25 = sphi 0, %s23
      %s26 = sphi 0, %s24
      %s36 = sphi 0, %s38
      %s39 = sphi 0, %s36
      %s40 = sphi 0, %s39
      %s56 = sphi 0, %s40
      %s64 = sphi 0, %s66
      %s67 = sphi 0, %s64
      %s68 = sphi 0, %s67
      %s84 = sphi 0, %s68
      %s92 = sphi 0, %s94
      %s95 = sphi 0, %s92
      %s96 = sphi 0, %s95
      %s112 = sphi 0, %s96
    $region4: #{tpu_custom_call.1} parent=1 // loop_header_branch
      %17 = sbr.rel (%p15) target = $region8
    $region5: #{tpu_custom_call.1} parent=1 // loop_body
      %s19 = ssub.s32 %s14, 1
      %s20 = ssub.s32 %s14, 2
      %s27 = sadd.s32 1, %s22
      %p28 = scmp.ge.s32.totalorder %s27, 1
      %s29 = scalar_select %p28, 0, %s27
      %s30 = sadd.s32 1, %s21
      %s31 = scalar_select %p28, %s30, %s21
      %p32 = scmp.ge.s32.totalorder %s31, 2
      %s33 = scalar_select %p32, 0, %s31
      %s34 = ssub.s32 %s21, %s33
      %p35 = scmp.eq.s32.totalorder %s34, 0
      %s37 = sadd.s32 %s36, 1
      %s38 = scalar_select %p35, %s36, %s37
      %p41 = pneg %p35
      %p42 = scmp.eq.s32.totalorder %s14, 1
      %p43 = por %p41, %p42
      %p44 = scmp.ne.s32.totalorder %s36, %s39
      %p45 = scmp.eq.s32.totalorder %s14, 0
      %p46 = por %p44, %p45
      %p47 = scmp.ne.s32.totalorder %s36, %s39
      %p48 = scmp.eq.s32.totalorder %s19, 1
      %p49 = por %p47, %p48
      %p50 = scmp.ne.s32.totalorder %s39, %s40
      %p51 = scmp.eq.s32.totalorder %s19, 0
      %p52 = por %p50, %p51
      %p53 = scmp.ne.s32.totalorder %s39, %s40
      %p54 = scmp.eq.s32.totalorder %s20, 1
      %p55 = por %p53, %p54
      %p57 = scmp.ne.s32.totalorder %s40, %s56
      %p58 = scmp.eq.s32.totalorder %s20, 0
      %p59 = por %p57, %p58
      %s60 = ssub.s32 %s21, %s33
      %s61 = ssub.s32 %s22, %s29
      %s62 = sor.u32 %s60, %s61
      %p63 = scmp.eq.s32.totalorder %s62, 0
      %s65 = sadd.s32 %s64, 1
      %s66 = scalar_select %p63, %s64, %s65
      %p69 = pneg %p63
      %p70 = scmp.eq.s32.totalorder %s14, 1
      %p71 = por %p69, %p70
      %p72 = scmp.ne.s32.totalorder %s64, %s67
      %p73 = scmp.eq.s32.totalorder %s14, 0
      %p74 = por %p72, %p73
      %p75 = scmp.ne.s32.totalorder %s64, %s67
      %p76 = scmp.eq.s32.totalorder %s19, 1
      %p77 = por %p75, %p76
      %p78 = scmp.ne.s32.totalorder %s67, %s68
      %p79 = scmp.eq.s32.totalorder %s19, 0
      %p80 = por %p78, %p79
      %p81 = scmp.ne.s32.totalorder %s67, %s68
      %p82 = scmp.eq.s32.totalorder %s20, 1
      %p83 = por %p81, %p82
      %p85 = scmp.ne.s32.totalorder %s68, %s84
      %p86 = scmp.eq.s32.totalorder %s20, 0
      %p87 = por %p85, %p86
      %s88 = ssub.s32 %s21, %s33
      %s89 = ssub.s32 %s22, %s29
      %s90 = sor.u32 %s88, %s89
      %p91 = scmp.eq.s32.totalorder %s90, 0
      %s93 = sadd.s32 %s92, 1
      %s94 = scalar_select %p91, %s92, %s93
      %p97 = pneg %p91
      %p98 = scmp.eq.s32.totalorder %s14, 1
      %p99 = por %p97, %p98
      %p100 = scmp.ne.s32.totalorder %s92, %s95
      %p101 = scmp.eq.s32.totalorder %s14, 0
      %p102 = por %p100, %p101
      %p103 = scmp.ne.s32.totalorder %s92, %s95
      %p104 = scmp.eq.s32.totalorder %s19, 1
      %p105 = por %p103, %p104
      %p106 = scmp.ne.s32.totalorder %s95, %s96
      %p107 = scmp.eq.s32.totalorder %s19, 0
      %p108 = por %p106, %p107
      %p109 = scmp.ne.s32.totalorder %s95, %s96
      %p110 = scmp.eq.s32.totalorder %s20, 1
      %p111 = por %p109, %p110
      %p113 = scmp.ne.s32.totalorder %s96, %s112
      %p114 = scmp.eq.s32.totalorder %s20, 0
      %p115 = por %p113, %p114
      %p116 = scmp.le.s32.totalorder 1, %s14
      %p117 = scmp.lt.s32.totalorder %s14, 3
      %p118 = pnand %p116, %p117
      %p119 = pneg %p118
      // Predicated region
      $region9: #{tpu_custom_call.1} parent=5 // pred_check
        _
      $region10: #{tpu_custom_call.1} parent=5 // pred_check_branch
        %121 = sbr.rel (%p118) target = $region12
      $region11: #{tpu_custom_call.1} parent=5 // pred_region
        %s122 = ssub.s32 %s14, 1
      $region12: #{tpu_custom_call.1} parent=5 // pred_fallthru
        _
      %p123 = scmp.lt.s32.totalorder %s14, 2
      // Predicated region
      $region13: #{tpu_custom_call.1} parent=5 // pred_check
        %p124 = pneg %p123
      $region14: #{tpu_custom_call.1} parent=5 // pred_check_branch
        %126 = sbr.rel (%p124) target = $region16
      $region15: #{tpu_custom_call.1} parent=5 // pred_region
        // Predicated region
        $region17: #{tpu_custom_call.1} parent=15 // pred_check
          %p127 = pneg %p46
        $region18: #{tpu_custom_call.1} parent=15 // pred_check_branch
          %129 = sbr.rel (%p127) target = $region20
        $region19: #{tpu_custom_call.1} parent=15 // pred_region
          %s130 = sand.u32 %s36, 1
          %s131 = scalar_lea.sflag [#allocation4], %s130
          %s132 = sand.u32 %s36, 1
          %s133 = smul.addr %s132, 16
          %s134 = scalar_lea.vmem [#allocation3], %s133
          %s136 = ssub.s32 256, 256
          %137 = vsyncadd %s131, %s136
          %s138 = smul.addr %s21, 2
          %s139 = smul.addr %s138, 128
          %s140 = scalar_lea.hbm %s0, %s139
          %s141 = sshll.u32 %s134, 4
          %s142 = int_to_ptr.vmem [resolvable:$true] %s141
          %147 = dma.hbm_to_vmem [thread:$0]  %s140, 256, %s142, %s131, 128, 128, 8
        $region20: #{tpu_custom_call.1} parent=15 // pred_fallthru
          _
        // Predicated region
        $region21: #{tpu_custom_call.1} parent=15 // pred_check
          %p148 = pneg %p74
        $region22: #{tpu_custom_call.1} parent=15 // pred_check_branch
          %150 = sbr.rel (%p148) target = $region24
        $region23: #{tpu_custom_call.1} parent=15 // pred_region
          %s151 = sand.u32 %s64, 1
          %s152 = scalar_lea.sflag [#allocation6], %s151
          %s153 = sand.u32 %s64, 1
          %s154 = smul.addr %s153, 16
          %s155 = scalar_lea.vmem [#allocation5], %s154
          %s156 = smul.u32 2, %s22
          %s158 = ssub.s32 256, 256
          %159 = vsyncadd %s152, %s158
          %s160 = smul.addr %s21, 2
          %s161 = sadd.s32 %s156, %s160
          %s162 = smul.addr %s161, 128
          %s163 = scalar_lea.hbm %s1, %s162
          %s164 = sshll.u32 %s155, 4
          %s165 = int_to_ptr.vmem [resolvable:$true] %s164
          %170 = dma.hbm_to_vmem [thread:$0]  %s163, 256, %s165, %s152, 128, 128, 8
        $region24: #{tpu_custom_call.1} parent=15 // pred_fallthru
          _
      $region16: #{tpu_custom_call.1} parent=5 // pred_fallthru
        _
      %p171 = scmp.le.s32.totalorder 1, %s14
      %p172 = scmp.lt.s32.totalorder %s14, 3
      %p173 = pnand %p171, %p172
      %p174 = pneg %p173
      // Predicated region
      $region25: #{tpu_custom_call.1} parent=5 // pred_check
        _
      $region26: #{tpu_custom_call.1} parent=5 // pred_check_branch
        %176 = sbr.rel (%p173) target = $region28
      $region27: #{tpu_custom_call.1} parent=5 // pred_region
        %s177 = ssub.s32 %s14, 1
        %s178 = sand.u32 %s39, 1
        %s179 = scalar_lea.sflag [#allocation4], %s178
        %s180 = sand.u32 %s39, 1
        %s181 = smul.addr %s180, 16
        %s182 = scalar_lea.vmem [#allocation3], %s181
        // Predicated region
        $region29: #{tpu_custom_call.1} parent=27 // pred_check
          %p183 = pneg %p52
        $region30: #{tpu_custom_call.1} parent=27 // pred_check_branch
          %185 = sbr.rel (%p183) target = $region32
        $region31: #{tpu_custom_call.1} parent=27 // pred_region
          %186 = dma.done %s179, 256
        $region32: #{tpu_custom_call.1} parent=27 // pred_fallthru
          _
        %s187 = sand.u32 %s67, 1
        %s188 = scalar_lea.sflag [#allocation6], %s187
        %s189 = sand.u32 %s67, 1
        %s190 = smul.addr %s189, 16
        %s191 = scalar_lea.vmem [#allocation5], %s190
        // Predicated region
        $region33: #{tpu_custom_call.1} parent=27 // pred_check
          %p192 = pneg %p80
        $region34: #{tpu_custom_call.1} parent=27 // pred_check_branch
          %194 = sbr.rel (%p192) target = $region36
        $region35: #{tpu_custom_call.1} parent=27 // pred_region
          %195 = dma.done %s188, 256
        $region36: #{tpu_custom_call.1} parent=27 // pred_fallthru
          _
        %s196 = sand.u32 %s39, 1
        %s197 = scalar_lea.sflag [#allocation4], %s196
        %s198 = sand.u32 %s39, 1
        %s199 = smul.addr %s198, 16
        %s200 = scalar_lea.vmem [#allocation3], %s199
        %p201 = pneg %p52
        %p202 = pneg %p49
        %s203 = sand.u32 %s67, 1
        %s204 = scalar_lea.sflag [#allocation6], %s203
        %s205 = sand.u32 %s67, 1
        %s206 = smul.addr %s205, 16
        %s207 = scalar_lea.vmem [#allocation5], %s206
        %p208 = pneg %p80
        %p209 = pneg %p77
        %p210 = pneg %p108
        %p211 = pneg %p105
        %s212 = smul.u32 2, %s24
        %p213 = scmp.lt.s32.totalorder %s23, 1
        %s214 = scalar_select %p213, %s23, 1
        %p215 = scmp.lt.s32.totalorder %s212, 1
        %s216 = scalar_select %p215, %s212, 1
        %s217 = smul.addr %s214, 2
        %s218 = sadd.s32 %s216, %s217
        %s219 = smul.addr %s218, 8
        %s220 = scalar_lea.vmem %s2, %s219
        %s221 = smul.u32 2, %s24
        %s222 = smul.u32 2, %s24
        %p223 = scmp.lt.s32.totalorder %s23, 1
        %s224 = scalar_select %p223, %s23, 1
        %p225 = scmp.lt.s32.totalorder %s222, 1
        %s226 = scalar_select %p225, %s222, 1
        %s227 = smul.addr %s224, 2
        %s228 = sadd.s32 %s226, %s227
        %s229 = smul.addr %s228, 8
        %s230 = scalar_lea.vmem %s2, %s229
        %s231 = smul.u32 2, %s24
        %v232 = vld [vmem:[%s182] sm:$0xff]
        %v233 = vld [vmem:[%s182 + $0x8] sm:$0xff]
        %v234 = vld [vmem:[%s191] sm:$0xff]
        %v235 = vld [vmem:[%s191 + $0x8] sm:$0xff]
        %p236 = scmp.eq.s32.totalorder %s24, 0
        // Predicated region
        $region37: #{tpu_custom_call.1} parent=27 // pred_check
          %p237 = pneg %p236
        $region38: #{tpu_custom_call.1} parent=27 // pred_check_branch
          %239 = sbr.rel (%p237) target = $region40
        $region39: #{tpu_custom_call.1} parent=27 // pred_region
          %v240 = vmul.f32 %v232, %v232
          %v241 = vmul.f32 %v233, %v233
          %vm242 = vcmask 261120
          %v244 = vsel %vm242, 1.0, 0
          %v247 = vsel %vm242, %v240, 0
          %v250 = vsel %vm242, %v241, 0
          %252 = vmatprep.subr.mxu0 0.0
          %253 = vmatpush1.xpose.msra.mxu0 %v247
          %254 = vmatprep.subr.mxu0 0.0
          %255 = vmatpush1.xpose.msra.mxu0 %v250
          %256 = vmatprep.subr.mxu0 0.0
          %257 = vmatpush1.xpose.msra.mxu0 0.0
          %258 = vmatprep.subr.mxu0 0.0
          %259 = vmatpush1.xpose.msra.mxu0 0.0
          %260 = vmatprep.subr.mxu0 0.0
          %261 = vmatpush1.xpose.msra.mxu0 0.0
          %262 = vmatprep.subr.mxu0 0.0
          %263 = vmatpush1.xpose.msra.mxu0 0.0
          %264 = vmatprep.subr.mxu0 0.0
          %265 = vmatpush1.xpose.msra.mxu0 0.0
          %266 = vmatprep.subr.mxu0 0.0
          %267 = vmatpush1.xpose.msra.mxu0 0.0
          %268 = vmatprep.subr.mxu0 0.0
          %269 = vmatpush1.xpose.msra.mxu0 0.0
          %270 = vmatprep.subr.mxu0 0.0
          %271 = vmatpush1.xpose.msra.mxu0 0.0
          %272 = vmatprep.subr.mxu0 0.0
          %273 = vmatpush1.xpose.msra.mxu0 0.0
          %274 = vmatprep.subr.mxu0 0.0
          %275 = vmatpush1.xpose.msra.mxu0 0.0
          %276 = vmatprep.subr.mxu0 0.0
          %277 = vmatpush1.xpose.msra.mxu0 0.0
          %278 = vmatprep.subr.mxu0 0.0
          %279 = vmatpush1.xpose.msra.mxu0 0.0
          %280 = vmatprep.subr.mxu0 0.0
          %281 = vmatpush1.xpose.msra.mxu0 0.0
          %282 = vmatprep.subr.mxu0 0.0
          %283 = vmatpush1.xpose.msra.mxu0 0.0
          %284 = vmatprep.subr.mxu0 0.0
          %285 = vmatpush1.xpose.msra.mxu0 0.0
          %286 = vmatprep.subr.mxu0 0.0
          %287 = vmatpush1.xpose.msra.mxu0 0.0
          %288 = vmatprep.subr.mxu0 0.0
          %289 = vmatpush1.xpose.msra.mxu0 0.0
          %290 = vmatprep.subr.mxu0 0.0
          %291 = vmatpush1.xpose.msra.mxu0 0.0
          %292 = vmatprep.subr.mxu0 0.0
          %293 = vmatpush1.xpose.msra.mxu0 0.0
          %294 = vmatprep.subr.mxu0 0.0
          %295 = vmatpush1.xpose.msra.mxu0 0.0
          %296 = vmatprep.subr.mxu0 0.0
          %297 = vmatpush1.xpose.msra.mxu0 0.0
          %298 = vmatprep.subr.mxu0 0.0
          %299 = vmatpush1.xpose.msra.mxu0 0.0
          %300 = vmatprep.subr.mxu0 0.0
          %301 = vmatpush1.xpose.msra.mxu0 0.0
          %302 = vmatprep.subr.mxu0 0.0
          %303 = vmatpush1.xpose.msra.mxu0 0.0
          %304 = vmatprep.subr.mxu0 0.0
          %305 = vmatpush1.xpose.msra.mxu0 0.0
          %306 = vmatprep.subr.mxu0 0.0
          %307 = vmatpush1.xpose.msra.mxu0 0.0
          %308 = vmatprep.subr.mxu0 0.0
          %309 = vmatpush1.xpose.msra.mxu0 0.0
          %310 = vmatprep.subr.mxu0 0.0
          %311 = vmatpush1.xpose.msra.mxu0 0.0
          %312 = vmatprep.subr.mxu0 0.0
          %313 = vmatpush1.xpose.msra.mxu0 0.0
          %314 = vmatprep.subr.mxu0 0.0
          %315 = vmatpush1.xpose.msra.mxu0 0.0
          %316 = vmatprep.mubr.f32.mxu0 0.0
          %317 = vmatmul.mubr.f32.gmra.mrb[0].mxu0 %v244
          %v318 = vpop.f32.mrb[0].mxu0
          %v319 = vadd.f32 0.0, %v318
          %v320 = vpop.f32.mrb[0].mxu0
          %321 = vdwg.mxu0
          %vm322 = vcmask 122880
          %323 = vst.msk [vmem:[#allocation2] sm:$0x1] %vm322, %v319
        $region40: #{tpu_custom_call.1} parent=27 // pred_fallthru
          _
        %vm324 = vcmask 261120
        %v326 = vsel %vm324, %v234, 0
        %v329 = vsel %vm324, %v235, 0
        %v332 = vsel %vm324, %v232, 0
        %v335 = vsel %vm324, %v233, 0
        %337 = vmatprep.subr.mxu0 0.0
        %338 = vmatpush1.xpose.msra.mxu0 %v332
        %339 = vmatprep.subr.mxu0 0.0
        %340 = vmatpush1.xpose.msra.mxu0 %v335
        %341 = vmatprep.subr.mxu0 0.0
        %342 = vmatpush1.xpose.msra.mxu0 0.0
        %343 = vmatprep.subr.mxu0 0.0
        %344 = vmatpush1.xpose.msra.mxu0 0.0
        %345 = vmatprep.subr.mxu0 0.0
        %346 = vmatpush1.xpose.msra.mxu0 0.0
        %347 = vmatprep.subr.mxu0 0.0
        %348 = vmatpush1.xpose.msra.mxu0 0.0
        %349 = vmatprep.subr.mxu0 0.0
        %350 = vmatpush1.xpose.msra.mxu0 0.0
        %351 = vmatprep.subr.mxu0 0.0
        %352 = vmatpush1.xpose.msra.mxu0 0.0
        %353 = vmatprep.subr.mxu0 0.0
        %354 = vmatpush1.xpose.msra.mxu0 0.0
        %355 = vmatprep.subr.mxu0 0.0
        %356 = vmatpush1.xpose.msra.mxu0 0.0
        %357 = vmatprep.subr.mxu0 0.0
        %358 = vmatpush1.xpose.msra.mxu0 0.0
        %359 = vmatprep.subr.mxu0 0.0
        %360 = vmatpush1.xpose.msra.mxu0 0.0
        %361 = vmatprep.subr.mxu0 0.0
        %362 = vmatpush1.xpose.msra.mxu0 0.0
        %363 = vmatprep.subr.mxu0 0.0
        %364 = vmatpush1.xpose.msra.mxu0 0.0
        %365 = vmatprep.subr.mxu0 0.0
        %366 = vmatpush1.xpose.msra.mxu0 0.0
        %367 = vmatprep.subr.mxu0 0.0
        %368 = vmatpush1.xpose.msra.mxu0 0.0
        %369 = vmatprep.subr.mxu0 0.0
        %370 = vmatpush1.xpose.msra.mxu0 0.0
        %371 = vmatprep.subr.mxu0 0.0
        %372 = vmatpush1.xpose.msra.mxu0 0.0
        %373 = vmatprep.subr.mxu0 0.0
        %374 = vmatpush1.xpose.msra.mxu0 0.0
        %375 = vmatprep.subr.mxu0 0.0
        %376 = vmatpush1.xpose.msra.mxu0 0.0
        %377 = vmatprep.subr.mxu0 0.0
        %378 = vmatpush1.xpose.msra.mxu0 0.0
        %379 = vmatprep.subr.mxu0 0.0
        %380 = vmatpush1.xpose.msra.mxu0 0.0
        %381 = vmatprep.subr.mxu0 0.0
        %382 = vmatpush1.xpose.msra.mxu0 0.0
        %383 = vmatprep.subr.mxu0 0.0
        %384 = vmatpush1.xpose.msra.mxu0 0.0
        %385 = vmatprep.subr.mxu0 0.0
        %386 = vmatpush1.xpose.msra.mxu0 0.0
        %387 = vmatprep.subr.mxu0 0.0
        %388 = vmatpush1.xpose.msra.mxu0 0.0
        %389 = vmatprep.subr.mxu0 0.0
        %390 = vmatpush1.xpose.msra.mxu0 0.0
        %391 = vmatprep.subr.mxu0 0.0
        %392 = vmatpush1.xpose.msra.mxu0 0.0
        %393 = vmatprep.subr.mxu0 0.0
        %394 = vmatpush1.xpose.msra.mxu0 0.0
        %395 = vmatprep.subr.mxu0 0.0
        %396 = vmatpush1.xpose.msra.mxu0 0.0
        %397 = vmatprep.subr.mxu0 0.0
        %398 = vmatpush1.xpose.msra.mxu0 0.0
        %399 = vmatprep.subr.mxu0 0.0
        %400 = vmatpush1.xpose.msra.mxu0 0.0
        %401 = vmatprep.mubr.f32.mxu0 0.0
        %402 = vmatmul.mubr.f32.gmra.mrb[0].mxu0 %v326
        %v403 = vpop.f32.mrb[0].mxu0
        %v404 = vadd.f32 0.0, %v403
        %v405 = vpop.f32.mrb[0].mxu0
        %406 = vmatprep.mubr.f32.mxu0 0.0
        %407 = vmatmul.mubr.f32.gmra.mrb[0].mxu0 %v329
        %v408 = vpop.f32.mrb[0].mxu0
        %v409 = vadd.f32 0.0, %v408
        %v410 = vpop.f32.mrb[0].mxu0
        %411 = vdwg.mxu0
        %v412 = vld [vmem:[#allocation2] sm:$0x1]
        %v413 = vmul.f32 %v404, 2.0
        %v414 = vmul.f32 %v409, 2.0
        %v416 = vlaneseq
        %v417 = vshrl.u32 %v416, 7
        %v418 = vsub.s32 0, %v417
        %v419 = vrot.slane %v412, %v418
        %v421 = vsub.f32 %v419, %v413
        %v422 = vsub.f32 %v419, %v414
        %v423 = vlaneseq
        %v424 = vand.u32 %v423, 127
        %vm425 = vcmask 130048
        %v426 = vsel %vm425, %v421, inf
        %427 = vmin.xlane.f32.xlu0 %v426
        %v428 = vpop.xlane.xlu0 %427
        %v429 = vsel %vm425, %v422, inf
        %430 = vmin.xlane.f32.xlu0 %v429
        %v431 = vpop.xlane.xlu0 %430
        %vm432 = vcmp.eq.f32.partialorder %v421, %v428
        %vm433 = vcmp.eq.f32.partialorder %v422, %v431
        %v434 = vsel %vm432, %v424, 16
        %v435 = vsel %vm433, %v424, 16
        %v436 = vsel %vm425, %v434, 2147483647
        %v437 = vand.u32 %v436, 65535
        %v438 = vshra.s32 %v436, 16
        %v439 = vcvt.s32.f32 %v437
        %v440 = vcvt.s32.f32 %v438
        %441 = vmin.xlane.f32.xlu0 %v440
        %v442 = vpop.xlane.xlu0 %441
        %vm443 = vcmp.eq.f32.partialorder %v440, %v442
        %v444 = vsel %vm443, %v439, inf
        %445 = vmin.xlane.f32.xlu0 %v444
        %v446 = vpop.xlane.xlu0 %445
        %v447 = vcvt.f32.s32 %v446
        %v448 = vcvt.f32.s32 %v442
        %v449 = vshll.u32 %v448, 16
        %v450 = vadd.s32 %v449, %v447
        %v451 = vsel %vm425, %v435, 2147483647
        %v452 = vand.u32 %v451, 65535
        %v453 = vshra.s32 %v451, 16
        %v454 = vcvt.s32.f32 %v452
        %v455 = vcvt.s32.f32 %v453
        %456 = vmin.xlane.f32.xlu0 %v455
        %v457 = vpop.xlane.xlu0 %456
        %vm458 = vcmp.eq.f32.partialorder %v455, %v457
        %v459 = vsel %vm458, %v454, inf
        %460 = vmin.xlane.f32.xlu0 %v459
        %v461 = vpop.xlane.xlu0 %460
        %v462 = vcvt.f32.s32 %v461
        %v463 = vcvt.f32.s32 %v457
        %v464 = vshll.u32 %v463, 16
        %v465 = vadd.s32 %v464, %v462
        %vm466 = vcmp.eq.s32.totalorder %v424, 0
        %v467 = vsel %vm466, %v450, 0
        %v468 = vsel %vm466, %v465, 0
        %vm469 = vcmp.eq.s32.totalorder %v424, %v450
        %vm470 = vcmp.eq.s32.totalorder %v424, %v465
        %v471 = vsel %vm469, inf, %v421
        %v472 = vsel %vm470, inf, %v422
        %v473 = vsel %vm425, %v471, inf
        %474 = vmin.xlane.f32.xlu0 %v473
        %v475 = vpop.xlane.xlu0 %474
        %v476 = vsel %vm425, %v472, inf
        %477 = vmin.xlane.f32.xlu0 %v476
        %v478 = vpop.xlane.xlu0 %477
        %vm479 = vcmp.eq.f32.partialorder %v471, %v475
        %vm480 = vcmp.eq.f32.partialorder %v472, %v478
        %v481 = vsel %vm479, %v424, 16
        %v482 = vsel %vm480, %v424, 16
        %v483 = vsel %vm425, %v481, 2147483647
        %v484 = vand.u32 %v483, 65535
        %v485 = vshra.s32 %v483, 16
        %v486 = vcvt.s32.f32 %v484
        %v487 = vcvt.s32.f32 %v485
        %488 = vmin.xlane.f32.xlu0 %v487
        %v489 = vpop.xlane.xlu0 %488
        %vm490 = vcmp.eq.f32.partialorder %v487, %v489
        %v491 = vsel %vm490, %v486, inf
        %492 = vmin.xlane.f32.xlu0 %v491
        %v493 = vpop.xlane.xlu0 %492
        %v494 = vcvt.f32.s32 %v493
        %v495 = vcvt.f32.s32 %v489
        %v496 = vshll.u32 %v495, 16
        %v497 = vadd.s32 %v496, %v494
        %v498 = vsel %vm425, %v482, 2147483647
        %v499 = vand.u32 %v498, 65535
        %v500 = vshra.s32 %v498, 16
        %v501 = vcvt.s32.f32 %v499
        %v502 = vcvt.s32.f32 %v500
        %503 = vmin.xlane.f32.xlu0 %v502
        %v504 = vpop.xlane.xlu0 %503
        %vm505 = vcmp.eq.f32.partialorder %v502, %v504
        %v506 = vsel %vm505, %v501, inf
        %507 = vmin.xlane.f32.xlu0 %v506
        %v508 = vpop.xlane.xlu0 %507
        %v509 = vcvt.f32.s32 %v508
        %v510 = vcvt.f32.s32 %v504
        %v511 = vshll.u32 %v510, 16
        %v512 = vadd.s32 %v511, %v509
        %vm513 = vcmp.eq.s32.totalorder %v424, 1
        %v514 = vsel %vm513, %v497, %v467
        %v515 = vsel %vm513, %v512, %v468
        %vm516 = vcmp.eq.s32.totalorder %v424, %v497
        %vm517 = vcmp.eq.s32.totalorder %v424, %v512
        %v518 = vsel %vm516, inf, %v471
        %v519 = vsel %vm517, inf, %v472
        %v520 = vsel %vm425, %v518, inf
        %521 = vmin.xlane.f32.xlu0 %v520
        %v522 = vpop.xlane.xlu0 %521
        %v523 = vsel %vm425, %v519, inf
        %524 = vmin.xlane.f32.xlu0 %v523
        %v525 = vpop.xlane.xlu0 %524
        %vm526 = vcmp.eq.f32.partialorder %v518, %v522
        %vm527 = vcmp.eq.f32.partialorder %v519, %v525
        %v528 = vsel %vm526, %v424, 16
        %v529 = vsel %vm527, %v424, 16
        %v530 = vsel %vm425, %v528, 2147483647
        %v531 = vand.u32 %v530, 65535
        %v532 = vshra.s32 %v530, 16
        %v533 = vcvt.s32.f32 %v531
        %v534 = vcvt.s32.f32 %v532
        %535 = vmin.xlane.f32.xlu0 %v534
        %v536 = vpop.xlane.xlu0 %535
        %vm537 = vcmp.eq.f32.partialorder %v534, %v536
        %v538 = vsel %vm537, %v533, inf
        %539 = vmin.xlane.f32.xlu0 %v538
        %v540 = vpop.xlane.xlu0 %539
        %v541 = vcvt.f32.s32 %v540
        %v542 = vcvt.f32.s32 %v536
        %v543 = vshll.u32 %v542, 16
        %v544 = vadd.s32 %v543, %v541
        %v545 = vsel %vm425, %v529, 2147483647
        %v546 = vand.u32 %v545, 65535
        %v547 = vshra.s32 %v545, 16
        %v548 = vcvt.s32.f32 %v546
        %v549 = vcvt.s32.f32 %v547
        %550 = vmin.xlane.f32.xlu0 %v549
        %v551 = vpop.xlane.xlu0 %550
        %vm552 = vcmp.eq.f32.partialorder %v549, %v551
        %v553 = vsel %vm552, %v548, inf
        %554 = vmin.xlane.f32.xlu0 %v553
        %v555 = vpop.xlane.xlu0 %554
        %v556 = vcvt.f32.s32 %v555
        %v557 = vcvt.f32.s32 %v551
        %v558 = vshll.u32 %v557, 16
        %v559 = vadd.s32 %v558, %v556
        %vm560 = vcmp.eq.s32.totalorder %v424, 2
        %v561 = vsel %vm560, %v544, %v514
        %v562 = vsel %vm560, %v559, %v515
        %vm563 = vcmp.eq.s32.totalorder %v424, %v544
        %vm564 = vcmp.eq.s32.totalorder %v424, %v559
        %v565 = vsel %vm563, inf, %v518
        %v566 = vsel %vm564, inf, %v519
        %v567 = vsel %vm425, %v565, inf
        %568 = vmin.xlane.f32.xlu0 %v567
        %v569 = vpop.xlane.xlu0 %568
        %v570 = vsel %vm425, %v566, inf
        %571 = vmin.xlane.f32.xlu0 %v570
        %v572 = vpop.xlane.xlu0 %571
        %vm573 = vcmp.eq.f32.partialorder %v565, %v569
        %vm574 = vcmp.eq.f32.partialorder %v566, %v572
        %v575 = vsel %vm573, %v424, 16
        %v576 = vsel %vm574, %v424, 16
        %v577 = vsel %vm425, %v575, 2147483647
        %v578 = vand.u32 %v577, 65535
        %v579 = vshra.s32 %v577, 16
        %v580 = vcvt.s32.f32 %v578
        %v581 = vcvt.s32.f32 %v579
        %582 = vmin.xlane.f32.xlu0 %v581
        %v583 = vpop.xlane.xlu0 %582
        %vm584 = vcmp.eq.f32.partialorder %v581, %v583
        %v585 = vsel %vm584, %v580, inf
        %586 = vmin.xlane.f32.xlu0 %v585
        %v587 = vpop.xlane.xlu0 %586
        %v588 = vcvt.f32.s32 %v587
        %v589 = vcvt.f32.s32 %v583
        %v590 = vshll.u32 %v589, 16
        %v591 = vadd.s32 %v590, %v588
        %v592 = vsel %vm425, %v576, 2147483647
        %v593 = vand.u32 %v592, 65535
        %v594 = vshra.s32 %v592, 16
        %v595 = vcvt.s32.f32 %v593
        %v596 = vcvt.s32.f32 %v594
        %597 = vmin.xlane.f32.xlu0 %v596
        %v598 = vpop.xlane.xlu0 %597
        %vm599 = vcmp.eq.f32.partialorder %v596, %v598
        %v600 = vsel %vm599, %v595, inf
        %601 = vmin.xlane.f32.xlu0 %v600
        %v602 = vpop.xlane.xlu0 %601
        %v603 = vcvt.f32.s32 %v602
        %v604 = vcvt.f32.s32 %v598
        %v605 = vshll.u32 %v604, 16
        %v606 = vadd.s32 %v605, %v603
        %vm607 = vcmp.eq.s32.totalorder %v424, 3
        %v608 = vsel %vm607, %v591, %v561
        %v609 = vsel %vm607, %v606, %v562
        %vm610 = vcmask 31744
        %611 = vst.msk [vmem:[%s230] sm:$0xff] %vm610, %v608
        %612 = vst.msk [vmem:[%s230 + $0x8] sm:$0xff] %vm610, %v609
        %s613 = smul.u32 2, %s24
        %p614 = scmp.lt.s32.totalorder %s23, 1
        %s615 = scalar_select %p614, %s23, 1
        %p616 = scmp.lt.s32.totalorder %s613, 1
        %s617 = scalar_select %p616, %s613, 1
        %s618 = smul.addr %s615, 2
        %s619 = sadd.s32 %s617, %s618
        %s620 = smul.addr %s619, 8
        %s621 = scalar_lea.vmem %s2, %s620
        // Predicated region
        $region41: #{tpu_custom_call.1} parent=27 // pred_check
          %p622 = pneg %p105
        $region42: #{tpu_custom_call.1} parent=27 // pred_check_branch
          %624 = sbr.rel (%p622) target = $region44
        $region43: #{tpu_custom_call.1} parent=27 // pred_region
          %s625 = smul.u32 2, %s24
        $region44: #{tpu_custom_call.1} parent=27 // pred_fallthru
          _
      $region28: #{tpu_custom_call.1} parent=5 // pred_fallthru
        _
      %p626 = scmp.le.s32.totalorder 2, %s14
      // Predicated region
      $region45: #{tpu_custom_call.1} parent=5 // pred_check
        %p627 = pneg %p626
      $region46: #{tpu_custom_call.1} parent=5 // pred_check_branch
        %629 = sbr.rel (%p627) target = $region48
      $region47: #{tpu_custom_call.1} parent=5 // pred_region
        %s630 = ssub.s32 %s14, 2
        // Predicated region
        $region49: #{tpu_custom_call.1} parent=47 // pred_check
          %p631 = pneg %p111
        $region50: #{tpu_custom_call.1} parent=47 // pred_check_branch
          %633 = sbr.rel (%p631) target = $region52
        $region51: #{tpu_custom_call.1} parent=47 // pred_region
          %s634 = smul.u32 2, %s26
          %p635 = scmp.lt.s32.totalorder %s25, 1
          %s636 = scalar_select %p635, %s25, 1
          %p637 = scmp.lt.s32.totalorder %s634, 1
          %s638 = scalar_select %p637, %s634, 1
          %s639 = smul.addr %s636, 2
          %s640 = sadd.s32 %s638, %s639
          %s641 = smul.addr %s640, 8
          %s642 = scalar_lea.vmem %s2, %s641
        $region52: #{tpu_custom_call.1} parent=47 // pred_fallthru
          _
      $region48: #{tpu_custom_call.1} parent=5 // pred_fallthru
        _
    $region6: #{tpu_custom_call.1} parent=1 // loop_footer
      %s18 = sadd.s32 1, %s14
    $region7: #{tpu_custom_call.1} parent=1 // loop_footer_branch
      %13 = sbr.rel target = $region3
    $region8: #{tpu_custom_call.1} parent=1 // loop_exit
      _
    %643 = vsyncpa [#allocation4], 1
    %s644 = scalar_lea.sflag [#allocation4], 1
    %645 = vsyncpa %s644, 1
    %646 = vsyncpa [#allocation6], 1
    %s647 = scalar_lea.sflag [#allocation6], 1
    %648 = vsyncpa %s647, 1

</llo_original>
